<compile_context>
chip_gen: v7x
topology: tpu7x:2x2x1
jax: 0.10.0
libtpu: 0.0.40
codegen_flags: <defaults>
</compile_context>

<pallas_src>
import jax
import jax.numpy as jnp
from jax.experimental import pallas as pl
from jax.experimental.pallas import tpu as pltpu


# ---------------------------------------------------------------------------
# small helpers
# ---------------------------------------------------------------------------

def _round_up(v, m):
    return ((v + m - 1) // m) * m


def _out_dim(inp, pad, k, dil, stride):
    return (inp + 2 * pad - dil * (k - 1) - 1) // stride + 1


def _rel_embedding(rel_h, rel_w, k0, k1, C):
    # matches StandAloneSelfAttention.get_rel_embedding, returned as (K, C):
    # rel_mat[k, c] == reference rel_embedding[c, k]
    h_emb = jnp.broadcast_to(rel_h[:, None, :], (k0, k1, C // 2))
    w_emb = jnp.broadcast_to(rel_w[None, :, :], (k0, k1, C // 2))
    return jnp.concatenate([h_emb, w_emb], axis=-1).reshape(k0 * k1, C)


# ---------------------------------------------------------------------------
# Pallas kernel 1: fused 1x1 transform (+ folded rel-logit rows) for all heads
# ---------------------------------------------------------------------------

def _transform_kernel(w_ref, x_ref, o_ref):
    # (N, Cin) @ (Cin, tm) -> (N, tm); lane-dense along the spatial tile.
    o_ref[0, :, :] = jnp.dot(
        w_ref[...], x_ref[0, :, :],
        preferred_element_type=jnp.float32).astype(o_ref.dtype)


def _pick_tm(M, B):
    # Largest tile in {2048,1024,512,256,128} that evenly divides the
    # 128-rounded spatial length and still yields >= 2 grid steps.
    m128 = _round_up(M, 128)
    best = 128
    for tm in (256, 512, 1024, 2048):
        if m128 % tm == 0 and B * (m128 // tm) >= 2:
            best = tm
    return best


def _transform_matmul(w_all, x_flat, out_dtype):
    """w_all: (N, Cin), x_flat: (B, Cin, HW) -> (B, N, HWpad), lane-dense."""
    N, Cin = w_all.shape
    B, _, HW = x_flat.shape
    tm = _pick_tm(HW, B)
    HWpad = _round_up(HW, 128)
    if HWpad != HW:
        x_flat = jnp.pad(x_flat, ((0, 0), (0, 0), (0, HWpad - HW)))
    return pl.pallas_call(
        _transform_kernel,
        out_shape=jax.ShapeDtypeStruct((B, N, HWpad), out_dtype),
        grid_spec=pltpu.PrefetchScalarGridSpec(
            num_scalar_prefetch=0,
            grid=(B, HWpad // tm),
            in_specs=[
                pl.BlockSpec((N, Cin), lambda b, i: (0, 0)),     # weights stay resident
                pl.BlockSpec((1, Cin, tm), lambda b, i: (b, 0, i)),
            ],
            out_specs=pl.BlockSpec((1, N, tm), lambda b, i: (b, 0, i)),
        ),
        compiler_params=pltpu.CompilerParams(
            dimension_semantics=("parallel", "parallel"),
            vmem_limit_bytes=32 * 1024 * 1024,
        ),
    )(w_all, x_flat)


# ---------------------------------------------------------------------------
# Pallas kernel 2: band-tiled attention over in-kernel shifted windows
# ---------------------------------------------------------------------------

def _make_attention_kernel(offsets, center_off, C, K, Ltile, Lblk, nbands):
    rows = 3 * C + K
    del rows  # scratch is sized by the caller

    def kernel(qkv_hbm, o_ref, in_buf, logit_scr, sem):
        b = pl.program_id(0)
        h = pl.program_id(1)
        i = pl.program_id(2)
        nb = pl.num_programs(2)
        slot = i % 2

        def band_copy(band, slot_):
            start = band * Ltile
            if not isinstance(start, int):
                start = pl.multiple_of(start, 128)
            return pltpu.make_async_copy(
                qkv_hbm.at[b, h, :, pl.ds(start, Lblk)],
                in_buf.at[slot_],
                sem.at[slot_])

        @pl.when(i == 0)                  # first band of this (b,h): no prefetch yet
        def _():
            band_copy(0, 0).start()

        band_copy(i, slot).wait()         # current band's data is ready

        @pl.when(i + 1 < nb)              # prefetch next band while computing this one
        def _():
            band_copy(jnp.minimum(i + 1, nbands - 1), 1 - slot).start()

        cur = in_buf.at[slot]                                       # (3C+K, Lblk) view
        key_c = cur[0:C, center_off:center_off + Ltile].astype(jnp.float32)

        # Pass A: per-window logits -> small VMEM scratch + running elementwise max.
        m = None
        for k, off in enumerate(offsets):
            q_k = cur[C:2 * C, off:off + Ltile].astype(jnp.float32)
            r_k = cur[3 * C + k:3 * C + k + 1,
                      center_off:center_off + Ltile].astype(jnp.float32)
            logit = jnp.sum(key_c * q_k, axis=0, keepdims=True) + r_k   # (1, Ltile)
            logit_scr[k:k + 1, :] = logit
            m = logit if m is None else jnp.maximum(m, logit)

        # Pass B: stable softmax + value accumulation; acc/denom live in vregs.
        denom = None
        acc = None
        for k, off in enumerate(offsets):
            e = jnp.exp(logit_scr[k:k + 1, :] - m)                      # (1, Ltile)
            v_k = cur[2 * C:3 * C, off:off + Ltile].astype(jnp.float32)
            denom = e if denom is None else denom + e
            term = v_k * e
            acc = term if acc is None else acc + term

        inv = pl.reciprocal(denom, approx=True)                         # EUP slot
        o_ref[0, 0, :, :] = (acc * inv).astype(o_ref.dtype)

    return kernel


# ---------------------------------------------------------------------------
# Wrapper glue (pure JAX reshapes / single pad, no transposes)
# ---------------------------------------------------------------------------

def stand_alone_multihead_attention(x, heads_params, kernel_size, stride,
                                    padding, dilation, *,
                                    intermediate_dtype=jnp.bfloat16,
                                    band=None):
    """x: (B, Cin, H, W) NCHW -> (B, num_heads*C_head, H_out, W_out) float32."""
    B, Cin, H, W = x.shape
    k0, k1 = kernel_size
    s0, s1 = stride
    p0, p1 = padding
    d0, d1 = dilation
    num_heads = len(heads_params)
    assert num_heads >= 1
    C = heads_params[0]["transform"].shape[0] // 3
    assert C % 2 == 0, "per-head out_channels must be even (rel embedding)"
    assert all(p["transform"].shape[0] == 3 * C for p in heads_params), \
        "all heads must share the same per-head channel count"
    K = k0 * k1
    rows = 3 * C + K

    H_out = _out_dim(H, p0, k0, d0, s0)
    W_out = _out_dim(W, p1, k1, d1, s1)
    Hp, Wp = H + 2 * p0, W + 2 * p1
    Lp = Hp * Wp                      # positions computed (whole padded grid)
    offsets = [kh * d0 * Wp + kw * d1 for kh in range(k0) for kw in range(k1)]
    center_off = (k0 // 2) * d0 * Wp + (k1 // 2) * d1
    max_off = max(offsets)

    # spatial band tiling (lane axis) with a 128-aligned halo
    Ltile = band if band is not None else min(1024, _round_up(Lp, 128))
    Ltile = _round_up(max(Ltile, 128), 128)
    nbands = pl.cdiv(Lp, Ltile)
    Lq = nbands * Ltile
    Hhalo = _round_up(max_off, 128) if max_off > 0 else 0
    Lblk = Ltile + Hhalo

    # ---- kernel 1: fused transform + folded rel rows, all heads in one matmul
    w_blocks = []
    for p in heads_params:
        w3 = p["transform"].astype(jnp.float32)                          # (3C, Cin)
        rel = _rel_embedding(p["rel_h"].astype(jnp.float32),
                             p["rel_w"].astype(jnp.float32), k0, k1, C)  # (K, C)
        w_rel = rel @ w3[:C]                                             # (K, Cin)
        w_blocks.append(jnp.concatenate([w3, w_rel], axis=0))            # (rows, Cin)
    w_all = jnp.concatenate(w_blocks, axis=0).astype(intermediate_dtype)

    x_flat = x.reshape(B, Cin, H * W).astype(intermediate_dtype)
    t = _transform_matmul(w_all, x_flat, intermediate_dtype)   # (B, heads*rows, HWpad)
    if t.shape[-1] != H * W:
        t = t[..., :H * W]
    t = t.reshape(B, num_heads, rows, H, W)

    # single zero-pad: (p0, p1) spatial halo + enough extra bottom rows so the
    # flattened length covers the last band's DMA window (Lq + Hhalo).
    extra_rows = max(0, -(-(Lq + Hhalo - Lp) // Wp))
    t = jnp.pad(t, ((0, 0), (0, 0), (0, 0), (p0, p0 + extra_rows), (p1, p1)))
    Lpad = (Hp + extra_rows) * Wp
    qkv_rel = t.reshape(B, num_heads, rows, Lpad)

    # ---- kernel 2: band-tiled attention -------------------------------------
    kernel = _make_attention_kernel(offsets, center_off, C, K, Ltile, Lblk, nbands)
    out_p = pl.pallas_call(
        kernel,
        out_shape=jax.ShapeDtypeStruct((B, num_heads, C, Lq), jnp.float32),
        grid_spec=pltpu.PrefetchScalarGridSpec(
            num_scalar_prefetch=0,
            grid=(B, num_heads, nbands),
            in_specs=[pl.BlockSpec(memory_space=pl.ANY)],        # stays in HBM; manual DMA
            out_specs=pl.BlockSpec((1, 1, C, Ltile), lambda b, h, i: (b, h, 0, i)),
            scratch_shapes=[
                pltpu.VMEM((2, rows, Lblk), intermediate_dtype),  # double-buffered band+halo
                pltpu.VMEM((K, Ltile), jnp.float32),              # per-window logits
                pltpu.SemaphoreType.DMA((2,)),
            ]),
        compiler_params=pltpu.CompilerParams(
            dimension_semantics=("parallel", "parallel", "arbitrary"),
            vmem_limit_bytes=32 * 1024 * 1024,
        ),
    )(qkv_rel)

    # keep only valid (strided) output positions; layout is already (B, heads, C, .)
    out = out_p[..., :Lp].reshape(B, num_heads, C, Hp, Wp)
    out = out[:, :, :, 0:s0 * (H_out - 1) + 1:s0, 0:s1 * (W_out - 1) + 1:s1]
    return out.reshape(B, num_heads * C, H_out, W_out)


# ---------------------------------------------------------------------------
# Pure-JAX reference (no Pallas) for verification
# ---------------------------------------------------------------------------

def _reference_head(x, params, kernel_size, stride, padding, dilation):
    B, Cin, H, W = x.shape
    k0, k1 = kernel_size
    s0, s1 = stride
    p0, p1 = padding
    d0, d1 = dilation
    w_t = params["transform"].astype(jnp.float32)
    C = w_t.shape[0] // 3
    H_out = _out_dim(H, p0, k0, d0, s0)
    W_out = _out_dim(W, p1, k1, d1, s1)
    t = jnp.einsum("nc,bchw->bnhw", w_t, x.astype(jnp.float32))
    key, query, value = t[:, :C], t[:, C:2 * C], t[:, 2 * C:]
    pad = lambda a: jnp.pad(a, ((0, 0), (0, 0), (p0, p0), (p1, p1)))
    key_p, query_p, value_p = pad(key), pad(query), pad(value)

    def patch(a, kh, kw):
        return jax.lax.slice(
            a, (0, 0, kh * d0, kw * d1),
            (B, C, kh * d0 + s0 * (H_out - 1) + 1,
             kw * d1 + s1 * (W_out - 1) + 1),
            (1, 1, s0, s1))

    q_uf = jnp.stack([patch(query_p, kh, kw)
                      for kh in range(k0) for kw in range(k1)], axis=2)
    v_uf = jnp.stack([patch(value_p, kh, kw)
                      for kh in range(k0) for kw in range(k1)], axis=2)
    key_c = patch(key_p, k0 // 2, k1 // 2)                 # (B, C, Ho, Wo)
    rel = _rel_embedding(params["rel_h"].astype(jnp.float32),
                         params["rel_w"].astype(jnp.float32), k0, k1, C)
    rel_b = rel.T[None, :, :, None, None]                  # (1, C, K, 1, 1)
    logits = jnp.sum(key_c[:, :, None] * (q_uf + rel_b), axis=1)
    attn = jax.nn.softmax(logits, axis=1)
    return jnp.sum(attn[:, None] * v_uf, axis=2)           # (B, C, Ho, Wo)


def _reference_multihead(x, heads_params, kernel_size, stride, padding, dilation):
    return jnp.concatenate(
        [_reference_head(x, p, kernel_size, stride, padding, dilation)
         for p in heads_params], axis=1)


# ---------------------------------------------------------------------------

if __name__ == "__main__":
    def run_case(key, B, in_channels, H, W, num_heads, out_channels,
                 kernel_size, stride, padding, dilation,
                 intermediate_dtype, band, tol):
        C_head = out_channels // num_heads
        kx, kp = jax.random.split(key)
        x = jax.random.normal(kx, (B, in_channels, H, W), dtype=jnp.float32)
        heads_params = []
        for h in range(num_heads):
            kh_key = jax.random.fold_in(kp, h)
            kw1, kw2, kw3 = jax.random.split(kh_key, 3)
            heads_params.append({
                # nn.Conv2d(in, 3*C_head, 1, bias=False).weight -> (3*C_head, Cin)
                "transform": 0.1 * jax.random.normal(
                    kw1, (3 * C_head, in_channels), jnp.float32),
                # nn.Embedding(k0, C_head // 2).weight
                "rel_h": 0.1 * jax.random.normal(
                    kw2, (kernel_size[0], C_head // 2), jnp.float32),
                # nn.Embedding(k1, C_head // 2).weight
                "rel_w": 0.1 * jax.random.normal(
                    kw3, (kernel_size[1], C_head // 2), jnp.float32),
            })
        out = stand_alone_multihead_attention(
            x, heads_params, kernel_size, stride, padding, dilation,
            intermediate_dtype=intermediate_dtype, band=band)
        out = jax.block_until_ready(out)
        ref = _reference_multihead(
            x, heads_params, kernel_size, stride, padding, dilation)
        H_out = _out_dim(H, padding[0], kernel_size[0], dilation[0], stride[0])
        W_out = _out_dim(W, padding[1], kernel_size[1], dilation[1], stride[1])
        assert out.shape == (B, out_channels, H_out, W_out), out.shape
        err = float(jnp.max(jnp.abs(out - ref)))
        assert err < tol, (err, tol)

    root = jax.random.PRNGKey(0)
    key_a, key_b, key_c = jax.random.split(root, 3)
    # primary case: bf16 intermediates (v6e/v7x fast path), single spatial band
    run_case(key_a, B=2, in_channels=4, H=16, W=16, num_heads=2,
             out_channels=8, kernel_size=(3, 3), stride=(1, 1),
             padding=(1, 1), dilation=(1, 1),
             intermediate_dtype=jnp.bfloat16, band=None, tol=2e-2)
    # f32 intermediates + tiny band: exercises multi-band halo DMA and the
    # cross-step prefetch chain (3 bands per (b, h)) with tight numerics
    run_case(key_b, B=2, in_channels=4, H=16, W=16, num_heads=2,
             out_channels=8, kernel_size=(3, 3), stride=(1, 1),
             padding=(1, 1), dilation=(1, 1),
             intermediate_dtype=jnp.float32, band=128, tol=5e-3)
    # ragged / strided case: exercises cdiv tiling + tail padding paths
    run_case(key_c, B=2, in_channels=4, H=9, W=9, num_heads=2,
             out_channels=8, kernel_size=(3, 3), stride=(2, 2),
             padding=(0, 0), dilation=(1, 1),
             intermediate_dtype=jnp.float32, band=None, tol=5e-3)
    print("KERNEL_OK")
</pallas_src>

<mosaic_0001>
module attributes {stable_mosaic.version = 11 : i64} {
  func.func @_transform_kernel(%arg0: i32, %arg1: i32, %arg2: memref<42x4xbf16, #tpu.memory_space<vmem>>, %arg3: memref<1x4x256xbf16, #tpu.memory_space<vmem>>, %arg4: memref<1x42x256xbf16, #tpu.memory_space<vmem>>) attributes {dimension_semantics = [#tpu.dimension_semantics<parallel>, #tpu.dimension_semantics<parallel>], iteration_bounds = array<i64: 2, 1>, scalar_prefetch = 0 : i64, scratch_operands = 0 : i64, tpu.core_type = #tpu.core_type<tc>, window_params = [{pipeline_mode = #tpu.pipeline_mode<synchronous>, transform_indices = @transform_0, window_bounds = array<i64: 42, 4>}, {transform_indices = @transform_1, window_bounds = array<i64: 1, 4, 256>}, {transform_indices = @transform_2, window_bounds = array<i64: 1, 42, 256>}]} {
    %c0 = arith.constant 0 : index
    %c0_0 = arith.constant 0 : index
    %0 = vector.load %arg2[%c0, %c0_0] : memref<42x4xbf16, #tpu.memory_space<vmem>>, vector<42x4xbf16>
    %c0_1 = arith.constant 0 : index
    %c0_2 = arith.constant 0 : index
    %c0_3 = arith.constant 0 : index
    %1 = vector.load %arg3[%c0_1, %c0_2, %c0_3] : memref<1x4x256xbf16, #tpu.memory_space<vmem>>, vector<1x4x256xbf16>
    %2 = vector.shape_cast %1 : vector<1x4x256xbf16> to vector<4x256xbf16>
    %cst = arith.constant dense<0.000000e+00> : vector<42x256xf32>
    %3 = tpu.matmul %0, %2, %cst {dimension_numbers = #tpu.dot_dimension_numbers<[1], [0], [0], [1], [0, 0, 1, 1], [], []>} : vector<42x4xbf16>, vector<4x256xbf16>, vector<42x256xf32> -> vector<42x256xf32>
    %4 = arith.truncf %3 : vector<42x256xf32> to vector<42x256xbf16>
    %c0_4 = arith.constant 0 : index
    %c0_5 = arith.constant 0 : index
    %c0_6 = arith.constant 0 : index
    %5 = vector.load %arg4[%c0_4, %c0_5, %c0_6] : memref<1x42x256xbf16, #tpu.memory_space<vmem>>, vector<1x42x256xbf16>
    %6 = vector.shape_cast %5 : vector<1x42x256xbf16> to vector<42x256xbf16>
    %7 = vector.shape_cast %4 : vector<42x256xbf16> to vector<1x42x256xbf16>
    tpu.vector_store %arg4[%c0_4, %c0_5, %c0_6], %7 {strides = array<i32>} : memref<1x42x256xbf16, #tpu.memory_space<vmem>>, vector<1x42x256xbf16>,
    return
  }
  func.func @transform_0(%arg0: i32, %arg1: i32) -> (i32, i32) {
    %c0_i32 = arith.constant 0 : i32
    %c0_i32_0 = arith.constant 0 : i32
    %c0_i32_1 = arith.constant 0 : i32
    return %c0_i32, %c0_i32_0 : i32, i32
  }
  func.func @transform_1(%arg0: i32, %arg1: i32) -> (i32, i32, i32) {
    %c0_i32 = arith.constant 0 : i32
    %c0_i32_0 = arith.constant 0 : i32
    return %arg0, %c0_i32, %arg1 : i32, i32, i32
  }
  func.func @transform_2(%arg0: i32, %arg1: i32) -> (i32, i32, i32) {
    %c0_i32 = arith.constant 0 : i32
    %c0_i32_0 = arith.constant 0 : i32
    return %arg0, %c0_i32, %arg1 : i32, i32, i32
  }
}

</mosaic_0001>

<llo_original>
// kernel: tpu_custom_call.1
$region0: #{tpu_custom_call.1}
  #allocation0 [shape = 'u32[]', space=smem, size = 0x4, offset = 0x4, fixed_abs, tag = 'smem constant byte address 0x4 - core index']
  #allocation1 [shape = 'u32[144,128]{1,0:T(1,128)}', space=vmem, size = 0x12000, scoped, tag = 'internal scratch']
  %s0 = inlined_call_operand.vmem [shape: bf16[42,4], index: 0, kind: input, shape index: {}]
  %s1 = inlined_call_operand.vmem [shape: bf16[2,4,256], index: 1, kind: input, shape index: {}]
  %s2 = inlined_call_operand.vmem [shape: bf16[2,42,256], index: 2, kind: output, shape index: {}]
  %s3 = sld [smem:[#allocation0]]
  $region41: #{tpu_custom_call.1} parent=0
    _
  %s5 = ssub.s32 1, %s3
  %s6 = scalar_select 0, %s5, %s3
  loop: start=0, step=1, limit=4
  $region2: #{tpu_custom_call.1} parent=0 // loop_pre_header
    _
  $region3: #{tpu_custom_call.1} parent=0 // loop_header
    %s8 = sphi 0, %s12
    %p9 = scmp.ge.s32.totalorder %s8, 4
    %s15 = sphi 0, %s27
    %s16 = sphi 0, %s23
    %s17 = sphi 0, %s15
    %s18 = sphi 0, %s16
    %s19 = sphi 0, %s17
    %s20 = sphi 0, %s18
    %s28 = sphi 0, %s28
    %s30 = sphi 0, %s28
    %s31 = sphi 0, %s30
    %s45 = sphi 0, %s31
    %s53 = sphi 0, %s55
    %s56 = sphi 0, %s53
    %s57 = sphi 0, %s56
    %s73 = sphi 0, %s57
    %s81 = sphi 0, %s83
    %s84 = sphi 0, %s81
    %s85 = sphi 0, %s84
    %s101 = sphi 0, %s85
  $region4: #{tpu_custom_call.1} parent=0 // loop_header_branch
    %11 = sbr.rel (%p9) target = $region8
  $region5: #{tpu_custom_call.1} parent=0 // loop_body
    %s13 = ssub.s32 %s8, 1
    %s14 = ssub.s32 %s8, 2
    %s21 = sadd.s32 1, %s16
    %p22 = scmp.ge.s32.totalorder %s21, 1
    %s23 = scalar_select %p22, 0, %s21
    %s24 = sadd.s32 1, %s15
    %s25 = scalar_select %p22, %s24, %s15
    %p26 = scmp.ge.s32.totalorder %s25, 2
    %s27 = scalar_select %p26, 0, %s25
    %s29 = sadd.s32 %s28, 1
    %p32 = scmp.eq.s32.totalorder %s8, 1
    %p33 = scmp.ne.s32.totalorder %s28, %s30
    %p34 = scmp.eq.s32.totalorder %s8, 0
    %p35 = por %p33, %p34
    %p36 = scmp.ne.s32.totalorder %s28, %s30
    %p37 = scmp.eq.s32.totalorder %s13, 1
    %p38 = por %p36, %p37
    %p39 = scmp.ne.s32.totalorder %s30, %s31
    %p40 = scmp.eq.s32.totalorder %s13, 0
    %p41 = por %p39, %p40
    %p42 = scmp.ne.s32.totalorder %s30, %s31
    %p43 = scmp.eq.s32.totalorder %s14, 1
    %p44 = por %p42, %p43
    %p46 = scmp.ne.s32.totalorder %s31, %s45
    %p47 = scmp.eq.s32.totalorder %s14, 0
    %p48 = por %p46, %p47
    %s49 = ssub.s32 %s15, %s27
    %s50 = ssub.s32 %s16, %s23
    %s51 = sor.u32 %s49, %s50
    %p52 = scmp.eq.s32.totalorder %s51, 0
    %s54 = sadd.s32 %s53, 1
    %s55 = scalar_select %p52, %s53, %s54
    %p58 = pneg %p52
    %p59 = scmp.eq.s32.totalorder %s8, 1
    %p60 = por %p58, %p59
    %p61 = scmp.ne.s32.totalorder %s53, %s56
    %p62 = scmp.eq.s32.totalorder %s8, 0
    %p63 = por %p61, %p62
    %p64 = scmp.ne.s32.totalorder %s53, %s56
    %p65 = scmp.eq.s32.totalorder %s13, 1
    %p66 = por %p64, %p65
    %p67 = scmp.ne.s32.totalorder %s56, %s57
    %p68 = scmp.eq.s32.totalorder %s13, 0
    %p69 = por %p67, %p68
    %p70 = scmp.ne.s32.totalorder %s56, %s57
    %p71 = scmp.eq.s32.totalorder %s14, 1
    %p72 = por %p70, %p71
    %p74 = scmp.ne.s32.totalorder %s57, %s73
    %p75 = scmp.eq.s32.totalorder %s14, 0
    %p76 = por %p74, %p75
    %s77 = ssub.s32 %s15, %s27
    %s78 = ssub.s32 %s16, %s23
    %s79 = sor.u32 %s77, %s78
    %p80 = scmp.eq.s32.totalorder %s79, 0
    %s82 = sadd.s32 %s81, 1
    %s83 = scalar_select %p80, %s81, %s82
    %p86 = pneg %p80
    %p87 = scmp.eq.s32.totalorder %s8, 1
    %p88 = por %p86, %p87
    %p89 = scmp.ne.s32.totalorder %s81, %s84
    %p90 = scmp.eq.s32.totalorder %s8, 0
    %p91 = por %p89, %p90
    %p92 = scmp.ne.s32.totalorder %s81, %s84
    %p93 = scmp.eq.s32.totalorder %s13, 1
    %p94 = por %p92, %p93
    %p95 = scmp.ne.s32.totalorder %s84, %s85
    %p96 = scmp.eq.s32.totalorder %s13, 0
    %p97 = por %p95, %p96
    %p98 = scmp.ne.s32.totalorder %s84, %s85
    %p99 = scmp.eq.s32.totalorder %s14, 1
    %p100 = por %p98, %p99
    %p102 = scmp.ne.s32.totalorder %s85, %s101
    %p103 = scmp.eq.s32.totalorder %s14, 0
    %p104 = por %p102, %p103
    %p105 = scmp.le.s32.totalorder 1, %s8
    %p106 = scmp.lt.s32.totalorder %s8, 3
    %p107 = pnand %p105, %p106
    %p108 = pneg %p107
    // Predicated region
    $region9: #{tpu_custom_call.1} parent=5 // pred_check
      _
    $region10: #{tpu_custom_call.1} parent=5 // pred_check_branch
      %110 = sbr.rel (%p107) target = $region12
    $region11: #{tpu_custom_call.1} parent=5 // pred_region
      %s111 = ssub.s32 %s8, 1
      // Predicated region
      $region13: #{tpu_custom_call.1} parent=11 // pred_check
        %p112 = pneg %p41
      $region14: #{tpu_custom_call.1} parent=11 // pred_check_branch
        %114 = sbr.rel (%p112) target = $region16
      $region15: #{tpu_custom_call.1} parent=11 // pred_region
        _
      $region16: #{tpu_custom_call.1} parent=11 // pred_fallthru
        _
    $region12: #{tpu_custom_call.1} parent=5 // pred_fallthru
      _
    %p115 = scmp.lt.s32.totalorder %s8, 2
    // Predicated region
    $region17: #{tpu_custom_call.1} parent=5 // pred_check
      %p116 = pneg %p115
    $region18: #{tpu_custom_call.1} parent=5 // pred_check_branch
      %118 = sbr.rel (%p116) target = $region20
    $region19: #{tpu_custom_call.1} parent=5 // pred_region
      // Predicated region
      $region21: #{tpu_custom_call.1} parent=19 // pred_check
        %p119 = pneg %p63
      $region22: #{tpu_custom_call.1} parent=19 // pred_check_branch
        %121 = sbr.rel (%p119) target = $region24
      $region23: #{tpu_custom_call.1} parent=19 // pred_region
        %s122 = smul.u32 2, %s16
        %p123 = scmp.lt.s32.totalorder %s15, 1
        %s124 = scalar_select %p123, %s15, 1
        %p125 = scmp.lt.s32.totalorder %s122, 1
        %s126 = scalar_select %p125, %s122, 1
        %s127 = smul.addr %s124, 2
        %s128 = sadd.s32 %s126, %s127
        %s129 = smul.addr %s128, 2
        %s130 = scalar_lea.vmem %s1, %s129
        %s131 = smul.u32 2, %s16
      $region24: #{tpu_custom_call.1} parent=19 // pred_fallthru
        _
    $region20: #{tpu_custom_call.1} parent=5 // pred_fallthru
      _
    %p132 = scmp.le.s32.totalorder 1, %s8
    %p133 = scmp.lt.s32.totalorder %s8, 3
    %p134 = pnand %p132, %p133
    %p135 = pneg %p134
    // Predicated region
    $region25: #{tpu_custom_call.1} parent=5 // pred_check
      _
    $region26: #{tpu_custom_call.1} parent=5 // pred_check_branch
      %137 = sbr.rel (%p134) target = $region28
    $region27: #{tpu_custom_call.1} parent=5 // pred_region
      %s138 = ssub.s32 %s8, 1
      %p139 = pneg %p41
      %p140 = pneg %p38
      %s141 = smul.u32 2, %s18
      %p142 = scmp.lt.s32.totalorder %s17, 1
      %s143 = scalar_select %p142, %s17, 1
      %p144 = scmp.lt.s32.totalorder %s141, 1
      %s145 = scalar_select %p144, %s141, 1
      %s146 = smul.addr %s143, 2
      %s147 = sadd.s32 %s145, %s146
      %s148 = smul.addr %s147, 2
      %s149 = scalar_lea.vmem %s1, %s148
      %p150 = pneg %p69
      %p151 = pneg %p66
      %p152 = pneg %p97
      %p153 = pneg %p94
      %s154 = smul.u32 2, %s18
      %p155 = scmp.lt.s32.totalorder %s17, 1
      %s156 = scalar_select %p155, %s17, 1
      %p157 = scmp.lt.s32.totalorder %s154, 1
      %s158 = scalar_select %p157, %s154, 1
      %s159 = smul.addr %s156, 12
      %s160 = sadd.s32 %s158, %s159
      %s161 = smul.addr %s160, 4
      %s162 = scalar_lea.vmem %s2, %s161
      %s163 = smul.u32 2, %s18
      %p164 = scmp.lt.s32.totalorder %s17, 1
      %s165 = scalar_select %p164, %s17, 1
      %p166 = scmp.lt.s32.totalorder %s163, 1
      %s167 = scalar_select %p166, %s163, 1
      %s168 = smul.addr %s165, 2
      %s169 = sadd.s32 %s167, %s168
      %s170 = smul.addr %s169, 2
      %s171 = scalar_lea.vmem %s1, %s170
      %s172 = smul.u32 2, %s18
      %s173 = smul.u32 2, %s18
      %p174 = scmp.lt.s32.totalorder %s17, 1
      %s175 = scalar_select %p174, %s17, 1
      %p176 = scmp.lt.s32.totalorder %s173, 1
      %s177 = scalar_select %p176, %s173, 1
      %s178 = smul.addr %s175, 12
      %s179 = sadd.s32 %s177, %s178
      %s180 = smul.addr %s179, 4
      %s181 = scalar_lea.vmem %s2, %s180
      %s182 = smul.u32 2, %s18
      %v184 = vld [vmem:[%s0] sm:$0xf]
      %v185 = vld [vmem:[%s0 + $0x4] sm:$0xf]
      %v186 = vld [vmem:[%s0 + $0x8] sm:$0xf]
      %v187 = vld [vmem:[%s0 + $0xc] sm:$0xf]
      %v188 = vld [vmem:[%s0 + $0x10] sm:$0xf]
      %v189 = vld [vmem:[%s0 + $0x14] sm:$0x1]
      %v190 = vld [vmem:[%s171] sm:$0xf]
      %v197 = vunpack.c.l.b16 %v184
      %v198 = vunpack.c.l.b16 %v185
      %v199 = vunpack.c.l.b16 %v186
      %v200 = vunpack.c.l.b16 %v187
      %v201 = vunpack.c.l.b16 %v188
      %v202 = vunpack.c.l.b16 %v189
      %v203 = vpack.c.b16 %v198, %v197
      %v204 = vpack.c.b16 %v200, %v199
      %v205 = vpack.c.b16 %v202, %v201
      %v208 = vunpack.c.l.s4 1983009808
      %v209 = vunpack.c.0.s8 %v208
      %v210 = vlaneseq
      %v211 = vshrl.u32 %v210, 7
      %v212 = vsub.s32 %v209, %v211
      %v213 = vrot.slane %v190, %v212
      %v214 = vcombine.high %v213, %v213
      %vm215 = vcmask 31744
      %v217 = vsel %vm215, %v203, 0
      %v220 = vsel %vm215, %v204, 0
      %v223 = vsel %vm215, %v205, 0
      %vm225 = vcmask 1041408
      %v227 = vsel %vm225, %v213, 0
      %v230 = vsel %vm225, %v214, 0
      %232 = vmatprep.subr.bf16.mxu0 %v230
      %233 = vmatpush1.bf16.msra.mxu0 %v227
      %234 = vmatprep.subr.bf16.mxu0 0
      %235 = vmatpush1.bf16.msra.mxu0 0
      %236 = vmatprep.subr.bf16.mxu0 0
      %237 = vmatpush1.bf16.msra.mxu0 0
      %238 = vmatprep.subr.bf16.mxu0 0
      %239 = vmatpush1.bf16.msra.mxu0 0
      %240 = vmatprep.subr.bf16.mxu0 0
      %241 = vmatpush1.bf16.msra.mxu0 0
      %242 = vmatprep.subr.bf16.mxu0 0
      %243 = vmatpush1.bf16.msra.mxu0 0
      %244 = vmatprep.subr.bf16.mxu0 0
      %245 = vmatpush1.bf16.msra.mxu0 0
      %246 = vmatprep.subr.bf16.mxu0 0
      %247 = vmatpush1.bf16.msra.mxu0 0
      %248 = vmatprep.subr.bf16.mxu0 0
      %249 = vmatpush1.bf16.msra.mxu0 0
      %250 = vmatprep.subr.bf16.mxu0 0
      %251 = vmatpush1.bf16.msra.mxu0 0
      %252 = vmatprep.subr.bf16.mxu0 0
      %253 = vmatpush1.bf16.msra.mxu0 0
      %254 = vmatprep.subr.bf16.mxu0 0
      %255 = vmatpush1.bf16.msra.mxu0 0
      %256 = vmatprep.subr.bf16.mxu0 0
      %257 = vmatpush1.bf16.msra.mxu0 0
      %258 = vmatprep.subr.bf16.mxu0 0
      %259 = vmatpush1.bf16.msra.mxu0 0
      %260 = vmatprep.subr.bf16.mxu0 0
      %261 = vmatpush1.bf16.msra.mxu0 0
      %262 = vmatprep.subr.bf16.mxu0 0
      %263 = vmatpush1.bf16.msra.mxu0 0
      %264 = vmatprep.mubr.bf16.mxu0 0
      %265 = vmatmul.mubr.bf16.gmra.mrb[0].mxu0 %v217
      %v266 = vpop.f32.mrb[0].mxu0
      %v267 = vadd.f32 0.0, %v266
      %v268 = vpop.f32.mrb[0].mxu0
      %v269 = vadd.f32 0.0, %v268
      %v270 = vpop.f32.mrb[0].mxu0
      %v271 = vadd.f32 0.0, %v270
      %v272 = vpop.f32.mrb[0].mxu0
      %v273 = vadd.f32 0.0, %v272
      %274 = vmatprep.mubr.bf16.mxu0 0
      %275 = vmatmul.mubr.bf16.gmra.mrb[0].mxu0 %v220
      %v276 = vpop.f32.mrb[0].mxu0
      %v277 = vadd.f32 0.0, %v276
      %v278 = vpop.f32.mrb[0].mxu0
      %v279 = vadd.f32 0.0, %v278
      %v280 = vpop.f32.mrb[0].mxu0
      %v281 = vadd.f32 0.0, %v280
      %v282 = vpop.f32.mrb[0].mxu0
      %v283 = vadd.f32 0.0, %v282
      %284 = vmatprep.mubr.bf16.mxu0 0
      %285 = vmatmul.mubr.bf16.gmra.mrb[0].mxu0 %v223
      %v286 = vpop.f32.mrb[0].mxu0
      %v287 = vadd.f32 0.0, %v286
      %v288 = vpop.f32.mrb[0].mxu0
      %v289 = vadd.f32 0.0, %v288
      %v290 = vpop.f32.mrb[0].mxu0
      %v291 = vadd.f32 0.0, %v290
      %v292 = vpop.f32.mrb[0].mxu0
      %v293 = vadd.f32 0.0, %v292
      %294 = vdwg.mxu0
      %v295 = vpack.c.bf16 %v271, %v267
      %v296 = vpack.c.bf16 %v273, %v269
      %v297 = vpack.c.bf16 %v281, %v277
      %v298 = vpack.c.bf16 %v283, %v279
      %v299 = vpack.c.bf16 %v291, %v287
      %v300 = vpack.c.bf16 %v293, %v289
      %v307 = vunpack.c.l.b16 %v295
      %v308 = vunpack.c.l.b16 %v296
      %v309 = vunpack.c.h.b16 %v295
      %v310 = vunpack.c.h.b16 %v296
      %v311 = vunpack.c.l.b16 %v297
      %v312 = vunpack.c.l.b16 %v298
      %v313 = vunpack.c.h.b16 %v297
      %v314 = vunpack.c.h.b16 %v298
      %v315 = vunpack.c.l.b16 %v299
      %v316 = vunpack.c.l.b16 %v300
      %v317 = vunpack.c.h.b16 %v299
      %v318 = vunpack.c.h.b16 %v300
      %v319 = vpack.c.b16 %v308, %v307
      %v320 = vpack.c.b16 %v310, %v309
      %v321 = vpack.c.b16 %v312, %v311
      %v322 = vpack.c.b16 %v314, %v313
      %v323 = vpack.c.b16 %v316, %v315
      %v324 = vpack.c.b16 %v318, %v317
      %331 = vst [vmem:[%s181] sm:$0xff] %v319
      %332 = vst [vmem:[%s181 + $0x8] sm:$0xff] %v320
      %333 = vst [vmem:[%s181 + $0x10] sm:$0xff] %v321
      %334 = vst [vmem:[%s181 + $0x18] sm:$0xff] %v322
      %335 = vst [vmem:[%s181 + $0x20] sm:$0xff] %v323
      %336 = vst [vmem:[%s181 + $0x28] sm:$0x11] %v324
      %s337 = smul.u32 2, %s18
      %p338 = scmp.lt.s32.totalorder %s17, 1
      %s339 = scalar_select %p338, %s17, 1
      %p340 = scmp.lt.s32.totalorder %s337, 1
      %s341 = scalar_select %p340, %s337, 1
      %s342 = smul.addr %s339, 12
      %s343 = sadd.s32 %s341, %s342
      %s344 = smul.addr %s343, 4
      %s345 = scalar_lea.vmem %s2, %s344
      // Predicated region
      $region29: #{tpu_custom_call.1} parent=27 // pred_check
        %p346 = pneg %p94
      $region30: #{tpu_custom_call.1} parent=27 // pred_check_branch
        %348 = sbr.rel (%p346) target = $region32
      $region31: #{tpu_custom_call.1} parent=27 // pred_region
        %s349 = smul.u32 2, %s18
      $region32: #{tpu_custom_call.1} parent=27 // pred_fallthru
        _
    $region28: #{tpu_custom_call.1} parent=5 // pred_fallthru
      _
    %p350 = scmp.le.s32.totalorder 2, %s8
    // Predicated region
    $region33: #{tpu_custom_call.1} parent=5 // pred_check
      %p351 = pneg %p350
    $region34: #{tpu_custom_call.1} parent=5 // pred_check_branch
      %353 = sbr.rel (%p351) target = $region36
    $region35: #{tpu_custom_call.1} parent=5 // pred_region
      %s354 = ssub.s32 %s8, 2
      // Predicated region
      $region37: #{tpu_custom_call.1} parent=35 // pred_check
        %p355 = pneg %p100
      $region38: #{tpu_custom_call.1} parent=35 // pred_check_branch
        %357 = sbr.rel (%p355) target = $region40
      $region39: #{tpu_custom_call.1} parent=35 // pred_region
        %s358 = smul.u32 2, %s20
        %p359 = scmp.lt.s32.totalorder %s19, 1
        %s360 = scalar_select %p359, %s19, 1
        %p361 = scmp.lt.s32.totalorder %s358, 1
        %s362 = scalar_select %p361, %s358, 1
        %s363 = smul.addr %s360, 12
        %s364 = sadd.s32 %s362, %s363
        %s365 = smul.addr %s364, 4
        %s366 = scalar_lea.vmem %s2, %s365
      $region40: #{tpu_custom_call.1} parent=35 // pred_fallthru
        _
    $region36: #{tpu_custom_call.1} parent=5 // pred_fallthru
      _
  $region6: #{tpu_custom_call.1} parent=0 // loop_footer
    %s12 = sadd.s32 1, %s8
  $region7: #{tpu_custom_call.1} parent=0 // loop_footer_branch
    %7 = sbr.rel target = $region3
  $region8: #{tpu_custom_call.1} parent=0 // loop_exit
    _

</llo_original>
